<compile_context>
chip_gen: v7x
topology: tpu7x:2x2x1
jax: 0.10.0
libtpu: 0.0.40
codegen_flags: <defaults>
</compile_context>

<pallas_src>
import jax
import jax.numpy as jnp
from jax.experimental import pallas as pl
from jax.experimental.pallas import tpu as pltpu

_LANE = 128
_SUBLANE = 16                       # bf16 sublane packing (also satisfies f32's 8)
_SINGLE_BUF_W_BYTES = 4 * 1024 * 1024


def _round_up(v, m):
    return ((v + m - 1) // m) * m


def _vmem_budget_bytes():
    """~70% of this chip's per-core VMEM (v5e/v6e: 128 MiB, v7x: 64 MiB)."""
    try:
        cap = pltpu.get_tpu_info().vmem_capacity_bytes
    except Exception:               # info unavailable -> assume the smallest (v7x) VMEM
        cap = 64 * 1024 * 1024
    return int(cap * 0.7)


def _timeblock_kernel(x_ref, w_ref, b_ref, o_ref):
    # x_ref: (tile_r, T*C_in)   f32  raw input rows (bf16 cast happens here, in VMEM)
    # w_ref: (T*C_in, 3*D_pad)  bf16 block-Toeplitz [conv1 | conv2(gate) | conv3]
    # b_ref: (1, 3*D_pad)       f32  per-branch biases tiled over time
    # o_ref: (tile_r, D_pad)    out_dtype (bf16 by default) — lane-dense store
    d = o_ref.shape[-1]                                  # D_pad, multiple of 128
    x = x_ref[...].astype(jnp.bfloat16)

    def branch(j):                                       # one 128-aligned column block
        return (jnp.dot(x, w_ref[:, pl.ds(j * d, d)],
                        preferred_element_type=jnp.float32)
                + b_ref[:, pl.ds(j * d, d)])

    acc = jax.nn.sigmoid(branch(1))                      # gate first: only a single
    acc = acc + branch(0)                                # (tile_r, d) f32 tensor stays
    acc = acc + branch(2)                                # live through the epilogue
    o_ref[...] = jnp.maximum(acc, 0.0).astype(o_ref.dtype)


def _toeplitz_weight(w, T, K=3):
    """Fold a (1, K) temporal conv (padding=(K-1)//2) into a block-Toeplitz matrix
    acting on the UN-padded series.

    w: (C_out, C_in, 1, K) PyTorch Conv2d layout (cross-correlation).
    Returns W (T*C_in, T*C_out) with
        W[p*C_in + i, q*C_out + o] = w[o, i, 0, p - q + K//2]   (when the tap is valid)
    so the zero time-padding is absorbed into the matrix and the kernel never needs a
    padded copy of X.
    """
    C_in, C_out = w.shape[1], w.shape[0]
    w_kic = jnp.transpose(w[:, :, 0, :], (2, 1, 0))              # (K, C_in, C_out)
    p = jnp.arange(T)[:, None]                                   # input time index
    q = jnp.arange(T)[None, :]                                   # output time index
    k = p - q + K // 2                                           # tap index
    valid = (k >= 0) & (k < K)
    blocks = jnp.where(valid[:, :, None, None],
                       w_kic[jnp.clip(k, 0, K - 1)], 0.0)        # (T, T, C_in, C_out)
    return jnp.transpose(blocks, (0, 2, 1, 3)).reshape(T * C_in, T * C_out)


def timeblock_forward(x, params, *, tile_r=1024, out_dtype=jnp.bfloat16):
    """x: (B, N, T, C_in) float32 -> (B, N, T, C_out) out_dtype.  K=3, time padding=1."""
    B, N, T, C_in = x.shape
    K = 3
    C_out = params["w1"].shape[0]
    R = B * N
    Kp = T * C_in                        # contraction width (un-padded series row)
    D = T * C_out                        # per-branch output width
    D_pad = _round_up(D, _LANE)          # lane-dense stores + 128-aligned epilogue slices

    # --- activations: FREE reshape; no pad / cast / extra HBM copy ---
    xr = x.reshape(R, Kp)

    # --- fused block-Toeplitz weights [conv1 | conv2(gate) | conv3] + tiled biases ---
    def branch_w(w):
        wt = _toeplitz_weight(w, T, K)
        return wt if D_pad == D else jnp.pad(wt, ((0, 0), (0, D_pad - D)))

    def branch_b(b):
        bt = jnp.tile(b, T)              # output layout is q*C_out + c
        return bt if D_pad == D else jnp.pad(bt, (0, D_pad - D))

    w_big = jnp.concatenate([branch_w(params["w1"]), branch_w(params["w2"]),
                             branch_w(params["w3"])], axis=1).astype(jnp.bfloat16)
    b_big = jnp.concatenate([branch_b(params["b1"]), branch_b(params["b2"]),
                             branch_b(params["b3"])]).reshape(1, 3 * D_pad).astype(jnp.float32)

    # --- tile_r selection: fit VMEM budget, keep >=2 grid steps (v7x megacore) ---
    out_bytes = jnp.dtype(out_dtype).itemsize
    w_bytes = int(w_big.size) * 2
    w_bufs = 1 if w_bytes > _SINGLE_BUF_W_BYTES else 2    # single-buffer big constant weights

    def footprint(t):
        return (2 * t * Kp * 4                    # x tile (f32), double-buffered
                + 2 * t * D_pad * out_bytes       # out tile, double-buffered
                + w_bufs * w_bytes                # fused weights (1 or 2 buffers)
                + 2 * 3 * D_pad * 4               # fused biases
                + 2 * t * D_pad * 4)              # f32 accumulator + in-flight dot result

    budget = _vmem_budget_bytes()
    R16 = _round_up(R, _SUBLANE)
    t = max(_SUBLANE, min((int(tile_r) // _SUBLANE) * _SUBLANE, R16))
    while t > _SUBLANE and footprint(t) > budget:
        t = max(_SUBLANE, ((t // 2) // _SUBLANE) * _SUBLANE)
    if t >= R16 and R16 >= 2 * _SUBLANE:          # >=2 steps so both v7x TCs get work
        t = max(_SUBLANE, ((R16 // 2) // _SUBLANE) * _SUBLANE)
    tile_r = t

    R_pad = _round_up(R, tile_r)
    if R_pad != R:
        xr = jnp.pad(xr, ((0, R_pad - R), (0, 0)))        # garbage rows sliced off below
    grid = (R_pad // tile_r,)

    const = lambda i: (0, 0)
    w_kwargs = dict(pipeline_mode=pl.Buffered(1)) if w_bufs == 1 else {}

    cost = pl.CostEstimate(
        flops=2 * R_pad * Kp * 3 * D_pad,
        transcendentals=R_pad * D_pad,                    # sigmoid gate
        bytes_accessed=(R_pad * Kp * 4 + w_bytes + 3 * D_pad * 4
                        + R_pad * D_pad * out_bytes))

    out = pl.pallas_call(
        _timeblock_kernel,
        out_shape=jax.ShapeDtypeStruct((R_pad, D_pad), out_dtype),
        grid_spec=pltpu.PrefetchScalarGridSpec(
            num_scalar_prefetch=0,
            grid=grid,
            in_specs=[
                pl.BlockSpec((tile_r, Kp), lambda i: (i, 0)),        # raw f32 series rows
                pl.BlockSpec((Kp, 3 * D_pad), const, **w_kwargs),    # fused weights
                pl.BlockSpec((1, 3 * D_pad), const),                 # fused biases
            ],
            out_specs=pl.BlockSpec((tile_r, D_pad), lambda i: (i, 0)),
        ),
        compiler_params=pltpu.CompilerParams(
            dimension_semantics=("parallel",),
            vmem_limit_bytes=int(min(budget,
                                     max(footprint(tile_r) * 3 // 2, 32 * 1024 * 1024)))),
        cost_estimate=cost,
    )(xr, w_big, b_big)

    return out[:R, :D].reshape(B, N, T, C_out)


def init_params(key, in_channels, out_channels, kernel_size=3):
    """Deterministic init mimicking nn.Conv2d default (uniform +/- 1/sqrt(fan_in))."""
    keys = jax.random.split(key, 6)
    fan_in = in_channels * 1 * kernel_size
    bound = 1.0 / jnp.sqrt(float(fan_in))
    shape_w = (out_channels, in_channels, 1, kernel_size)

    def u(k, shape):
        return jax.random.uniform(k, shape, jnp.float32, -bound, bound)

    return {
        "w1": u(keys[0], shape_w), "b1": u(keys[1], (out_channels,)),
        "w2": u(keys[2], shape_w), "b2": u(keys[3], (out_channels,)),
        "w3": u(keys[4], shape_w), "b3": u(keys[5], (out_channels,)),
    }


def _reference(x, params):
    """Plain-JAX f32 reference of the PyTorch forward."""
    B, N, T, C_in = x.shape
    xp = jnp.pad(x, ((0, 0), (0, 0), (1, 1), (0, 0)))

    def conv(w, b):
        taps = jnp.stack([xp[:, :, k:k + T, :] for k in range(3)], axis=-1)  # (B,N,T,Ci,K)
        return jnp.einsum("bntik,oik->bnto", taps, w[:, :, 0, :],
                          precision="highest") + b

    y1 = conv(params["w1"], params["b1"])
    y2 = conv(params["w2"], params["b2"])
    y3 = conv(params["w3"], params["b3"])
    return jnp.maximum(y1 + jax.nn.sigmoid(y2) + y3, 0.0)


if __name__ == "__main__":
    key = jax.random.PRNGKey(0)
    k_x, k_p = jax.random.split(key)

    B, N, T = 2, 16, 8          # batch, num_nodes, num_timesteps
    C_in, C_out = 4, 32         # in/out channels

    x = jax.random.normal(k_x, (B, N, T, C_in), dtype=jnp.float32)
    params = init_params(k_p, C_in, C_out, kernel_size=3)

    out_bf16 = jax.block_until_ready(timeblock_forward(x, params))  # default bf16 output
    out_f32 = jax.block_until_ready(timeblock_forward(x, params, out_dtype=jnp.float32))
    assert out_bf16.shape == (B, N, T, C_out) and out_bf16.dtype == jnp.bfloat16
    assert out_f32.shape == (B, N, T, C_out) and out_f32.dtype == jnp.float32

    # Tight check: identical math on bf16-rounded operands (kernel accumulates in f32).
    xq = x.astype(jnp.bfloat16).astype(jnp.float32)
    pq = dict(params)
    for wname in ("w1", "w2", "w3"):
        pq[wname] = params[wname].astype(jnp.bfloat16).astype(jnp.float32)
    ref_tight = _reference(xq, pq)
    assert jnp.allclose(out_f32, ref_tight, atol=1e-3, rtol=1e-3), \
        float(jnp.max(jnp.abs(out_f32 - ref_tight)))

    # bf16 output path only differs from the f32 path by the final store rounding.
    assert jnp.allclose(out_bf16.astype(jnp.float32), out_f32, atol=1e-2, rtol=2e-2), \
        float(jnp.max(jnp.abs(out_bf16.astype(jnp.float32) - out_f32)))

    # Loose checks vs exact f32 module semantics (only bf16 rounding differs).
    ref_f32 = _reference(x, params)
    assert jnp.allclose(out_f32, ref_f32, atol=1e-1, rtol=1e-1), \
        float(jnp.max(jnp.abs(out_f32 - ref_f32)))
    assert jnp.allclose(out_bf16.astype(jnp.float32), ref_f32, atol=1.5e-1, rtol=1.5e-1), \
        float(jnp.max(jnp.abs(out_bf16.astype(jnp.float32) - ref_f32)))

    print("KERNEL_OK")
</pallas_src>

<mosaic_0001>
module attributes {stable_mosaic.version = 11 : i64} {
  func.func @_timeblock_kernel(%arg0: i32, %arg1: memref<16x32xf32, #tpu.memory_space<vmem>>, %arg2: memref<32x768xbf16, #tpu.memory_space<vmem>>, %arg3: memref<1x768xf32, #tpu.memory_space<vmem>>, %arg4: memref<16x256xbf16, #tpu.memory_space<vmem>>) attributes {dimension_semantics = [#tpu.dimension_semantics<parallel>], iteration_bounds = array<i64: 2>, scalar_prefetch = 0 : i64, scratch_operands = 0 : i64, tpu.core_type = #tpu.core_type<tc>, window_params = [{transform_indices = @transform_0, window_bounds = array<i64: 16, 32>}, {pipeline_mode = #tpu.pipeline_mode<synchronous>, transform_indices = @transform_1, window_bounds = array<i64: 32, 768>}, {pipeline_mode = #tpu.pipeline_mode<synchronous>, transform_indices = @transform_2, window_bounds = array<i64: 1, 768>}, {transform_indices = @transform_3, window_bounds = array<i64: 16, 256>}]} {
    %c0 = arith.constant 0 : index
    %c0_0 = arith.constant 0 : index
    %0 = vector.load %arg1[%c0, %c0_0] : memref<16x32xf32, #tpu.memory_space<vmem>>, vector<16x32xf32>
    %1 = arith.truncf %0 : vector<16x32xf32> to vector<16x32xbf16>
    %c0_1 = arith.constant 0 : index
    %c256 = arith.constant 256 : index
    %2 = vector.load %arg2[%c0_1, %c256] : memref<32x768xbf16, #tpu.memory_space<vmem>>, vector<32x256xbf16>
    %cst = arith.constant dense<0.000000e+00> : vector<16x256xf32>
    %3 = tpu.matmul %1, %2, %cst {dimension_numbers = #tpu.dot_dimension_numbers<[1], [0], [0], [1], [0, 0, 1, 1], [], []>} : vector<16x32xbf16>, vector<32x256xbf16>, vector<16x256xf32> -> vector<16x256xf32>
    %c0_2 = arith.constant 0 : index
    %c256_3 = arith.constant 256 : index
    %4 = vector.load %arg3[%c0_2, %c256_3] : memref<1x768xf32, #tpu.memory_space<vmem>>, vector<1x256xf32>
    %5 = vector.broadcast %4 : vector<1x256xf32> to vector<16x256xf32>
    %6 = arith.addf %3, %5 : vector<16x256xf32>
    %7 = arith.negf %6 : vector<16x256xf32>
    %8 = math.exp %7 : vector<16x256xf32>
    %cst_4 = arith.constant 1.000000e+00 : f32
    %9 = vector.broadcast %cst_4 : f32 to vector<16x256xf32>
    %10 = arith.addf %9, %8 : vector<16x256xf32>
    %11 = arith.divf %9, %10 : vector<16x256xf32>
    %c0_5 = arith.constant 0 : index
    %c0_6 = arith.constant 0 : index
    %12 = vector.load %arg2[%c0_5, %c0_6] : memref<32x768xbf16, #tpu.memory_space<vmem>>, vector<32x256xbf16>
    %cst_7 = arith.constant dense<0.000000e+00> : vector<16x256xf32>
    %13 = tpu.matmul %1, %12, %cst_7 {dimension_numbers = #tpu.dot_dimension_numbers<[1], [0], [0], [1], [0, 0, 1, 1], [], []>} : vector<16x32xbf16>, vector<32x256xbf16>, vector<16x256xf32> -> vector<16x256xf32>
    %c0_8 = arith.constant 0 : index
    %c0_9 = arith.constant 0 : index
    %14 = vector.load %arg3[%c0_8, %c0_9] : memref<1x768xf32, #tpu.memory_space<vmem>>, vector<1x256xf32>
    %15 = vector.broadcast %14 : vector<1x256xf32> to vector<16x256xf32>
    %16 = arith.addf %13, %15 : vector<16x256xf32>
    %17 = arith.addf %11, %16 : vector<16x256xf32>
    %c0_10 = arith.constant 0 : index
    %c512 = arith.constant 512 : index
    %18 = vector.load %arg2[%c0_10, %c512] : memref<32x768xbf16, #tpu.memory_space<vmem>>, vector<32x256xbf16>
    %cst_11 = arith.constant dense<0.000000e+00> : vector<16x256xf32>
    %19 = tpu.matmul %1, %18, %cst_11 {dimension_numbers = #tpu.dot_dimension_numbers<[1], [0], [0], [1], [0, 0, 1, 1], [], []>} : vector<16x32xbf16>, vector<32x256xbf16>, vector<16x256xf32> -> vector<16x256xf32>
    %c0_12 = arith.constant 0 : index
    %c512_13 = arith.constant 512 : index
    %20 = vector.load %arg3[%c0_12, %c512_13] : memref<1x768xf32, #tpu.memory_space<vmem>>, vector<1x256xf32>
    %21 = vector.broadcast %20 : vector<1x256xf32> to vector<16x256xf32>
    %22 = arith.addf %19, %21 : vector<16x256xf32>
    %23 = arith.addf %17, %22 : vector<16x256xf32>
    %cst_14 = arith.constant 0.000000e+00 : f32
    %24 = vector.broadcast %cst_14 : f32 to vector<16x256xf32>
    %25 = arith.maximumf %23, %24 : vector<16x256xf32>
    %26 = arith.truncf %25 : vector<16x256xf32> to vector<16x256xbf16>
    %c0_15 = arith.constant 0 : index
    %c0_16 = arith.constant 0 : index
    %27 = vector.load %arg4[%c0_15, %c0_16] : memref<16x256xbf16, #tpu.memory_space<vmem>>, vector<16x256xbf16>
    tpu.vector_store %arg4[%c0_15, %c0_16], %26 {strides = array<i32>} : memref<16x256xbf16, #tpu.memory_space<vmem>>, vector<16x256xbf16>,
    return
  }
  func.func @transform_0(%arg0: i32) -> (i32, i32) {
    %c0_i32 = arith.constant 0 : i32
    %c0_i32_0 = arith.constant 0 : i32
    return %arg0, %c0_i32 : i32, i32
  }
  func.func @transform_1(%arg0: i32) -> (i32, i32) {
    %c0_i32 = arith.constant 0 : i32
    %c0_i32_0 = arith.constant 0 : i32
    %c0_i32_1 = arith.constant 0 : i32
    return %c0_i32, %c0_i32_0 : i32, i32
  }
  func.func @transform_2(%arg0: i32) -> (i32, i32) {
    %c0_i32 = arith.constant 0 : i32
    %c0_i32_0 = arith.constant 0 : i32
    %c0_i32_1 = arith.constant 0 : i32
    return %c0_i32, %c0_i32_0 : i32, i32
  }
  func.func @transform_3(%arg0: i32) -> (i32, i32) {
    %c0_i32 = arith.constant 0 : i32
    %c0_i32_0 = arith.constant 0 : i32
    return %arg0, %c0_i32 : i32, i32
  }
}

</mosaic_0001>

<llo_original>
// kernel: tpu_custom_call.1
$region0: #{tpu_custom_call.1}
  #allocation0 [shape = 'u32[]', space=smem, size = 0x4, offset = 0x4, fixed_abs, tag = 'smem constant byte address 0x4 - core index']
  #allocation1 [shape = 'u32[144,128]{1,0:T(1,128)}', space=vmem, size = 0x12000, scoped, tag = 'internal scratch']
  %s0 = inlined_call_operand.hbm [shape: f32[32,32], index: 0, kind: input, shape index: {}]
  %s1 = inlined_call_operand.hbm [shape: bf16[32,768], index: 1, kind: input, shape index: {}]
  %s2 = inlined_call_operand.vmem [shape: f32[1,768], index: 2, kind: input, shape index: {}]
  %s3 = inlined_call_operand.hbm [shape: bf16[32,256], index: 3, kind: output, shape index: {}]
  %s4 = sld [smem:[#allocation0]]
  $region53: #{tpu_custom_call.1} parent=0
    _
  %s6 = ssub.s32 1, %s4
  %s7 = scalar_select 0, %s6, %s4
  $region1: #{tpu_custom_call.1} parent=0
    #allocation2 [shape = 'u8[16384]{0}', space=vmem, size = 0x4000, scoped, tag = 'input window, operand 0']
    #allocation3 [shape = 's32[2]{0}', space=sflag, size = 0x8, scoped, tag = 'scoped memory for tpu_custom_call.1']
    #allocation4 [shape = 's32[2]{0}', space=sflag, size = 0x8, scoped, tag = 'scoped memory for tpu_custom_call.1']
    #allocation5 [shape = 'u8[49152]{0}', space=vmem, size = 0xc000, scoped, tag = 'input window, operand 1, single buffered']
    #allocation6 [shape = 's32[1]{0}', space=sflag, size = 0x4, scoped, tag = 'scoped memory for tpu_custom_call.1']
    #allocation7 [shape = 'u8[16384]{0}', space=vmem, size = 0x4000, scoped, tag = 'output window, operand 0']
    %8 = vsyncpa [#allocation3], 0
    %s9 = scalar_lea.sflag [#allocation3], 1
    %10 = vsyncpa %s9, 0
    %11 = vsyncpa [#allocation6], 0
    %12 = vsyncpa [#allocation4], 0
    %s13 = scalar_lea.sflag [#allocation4], 1
    %14 = vsyncpa %s13, 0
    loop: start=0, step=1, limit=4
    $region2: #{tpu_custom_call.1} parent=1 // loop_pre_header
      _
    $region3: #{tpu_custom_call.1} parent=1 // loop_header
      %s16 = sphi 0, %s20
      %p17 = scmp.ge.s32.totalorder %s16, 4
      %s26 = sphi 0, %s28
      %s29 = sphi 0, %s26
      %s30 = sphi 0, %s29
      %s46 = sphi 0, %s30
      %s50 = sphi 0, %s50
      %s52 = sphi 0, %s50
      %s53 = sphi 0, %s52
      %s67 = sphi 0, %s53
      %s71 = sphi 0, %s71
      %s73 = sphi 0, %s71
      %s74 = sphi 0, %s73
      %s88 = sphi 0, %s74
      %s94 = sphi 0, %s96
      %s97 = sphi 0, %s94
      %s98 = sphi 0, %s97
      %s114 = sphi 0, %s98
    $region4: #{tpu_custom_call.1} parent=1 // loop_header_branch
      %19 = sbr.rel (%p17) target = $region8
    $region5: #{tpu_custom_call.1} parent=1 // loop_body
      %s21 = ssub.s32 %s16, 1
      %s22 = ssub.s32 %s16, 2
      %s23 = sadd.s32 %s16, 1
      %s24 = ssub.s32 %s16, %s23
      %p25 = scmp.eq.s32.totalorder %s24, 0
      %s27 = sadd.s32 %s26, 1
      %s28 = scalar_select %p25, %s26, %s27
      %p31 = pneg %p25
      %p32 = scmp.eq.s32.totalorder %s16, 1
      %p33 = por %p31, %p32
      %p34 = scmp.ne.s32.totalorder %s26, %s29
      %p35 = scmp.eq.s32.totalorder %s16, 0
      %p36 = por %p34, %p35
      %p37 = scmp.ne.s32.totalorder %s26, %s29
      %p38 = scmp.eq.s32.totalorder %s21, 1
      %p39 = por %p37, %p38
      %p40 = scmp.ne.s32.totalorder %s29, %s30
      %p41 = scmp.eq.s32.totalorder %s21, 0
      %p42 = por %p40, %p41
      %p43 = scmp.ne.s32.totalorder %s29, %s30
      %p44 = scmp.eq.s32.totalorder %s22, 1
      %p45 = por %p43, %p44
      %p47 = scmp.ne.s32.totalorder %s30, %s46
      %p48 = scmp.eq.s32.totalorder %s22, 0
      %p49 = por %p47, %p48
      %s51 = sadd.s32 %s50, 1
      %p54 = scmp.eq.s32.totalorder %s16, 1
      %p55 = scmp.ne.s32.totalorder %s50, %s52
      %p56 = scmp.eq.s32.totalorder %s16, 0
      %p57 = por %p55, %p56
      %p58 = scmp.ne.s32.totalorder %s50, %s52
      %p59 = scmp.eq.s32.totalorder %s21, 1
      %p60 = por %p58, %p59
      %p61 = scmp.ne.s32.totalorder %s52, %s53
      %p62 = scmp.eq.s32.totalorder %s21, 0
      %p63 = por %p61, %p62
      %p64 = scmp.ne.s32.totalorder %s52, %s53
      %p65 = scmp.eq.s32.totalorder %s22, 1
      %p66 = por %p64, %p65
      %p68 = scmp.ne.s32.totalorder %s53, %s67
      %p69 = scmp.eq.s32.totalorder %s22, 0
      %p70 = por %p68, %p69
      %s72 = sadd.s32 %s71, 1
      %p75 = scmp.eq.s32.totalorder %s16, 1
      %p76 = scmp.ne.s32.totalorder %s71, %s73
      %p77 = scmp.eq.s32.totalorder %s16, 0
      %p78 = por %p76, %p77
      %p79 = scmp.ne.s32.totalorder %s71, %s73
      %p80 = scmp.eq.s32.totalorder %s21, 1
      %p81 = por %p79, %p80
      %p82 = scmp.ne.s32.totalorder %s73, %s74
      %p83 = scmp.eq.s32.totalorder %s21, 0
      %p84 = por %p82, %p83
      %p85 = scmp.ne.s32.totalorder %s73, %s74
      %p86 = scmp.eq.s32.totalorder %s22, 1
      %p87 = por %p85, %p86
      %p89 = scmp.ne.s32.totalorder %s74, %s88
      %p90 = scmp.eq.s32.totalorder %s22, 0
      %p91 = por %p89, %p90
      %s92 = ssub.s32 %s16, %s23
      %p93 = scmp.eq.s32.totalorder %s92, 0
      %s95 = sadd.s32 %s94, 1
      %s96 = scalar_select %p93, %s94, %s95
      %p99 = pneg %p93
      %p100 = scmp.eq.s32.totalorder %s16, 1
      %p101 = por %p99, %p100
      %p102 = scmp.ne.s32.totalorder %s94, %s97
      %p103 = scmp.eq.s32.totalorder %s16, 0
      %p104 = por %p102, %p103
      %p105 = scmp.ne.s32.totalorder %s94, %s97
      %p106 = scmp.eq.s32.totalorder %s21, 1
      %p107 = por %p105, %p106
      %p108 = scmp.ne.s32.totalorder %s97, %s98
      %p109 = scmp.eq.s32.totalorder %s21, 0
      %p110 = por %p108, %p109
      %p111 = scmp.ne.s32.totalorder %s97, %s98
      %p112 = scmp.eq.s32.totalorder %s22, 1
      %p113 = por %p111, %p112
      %p115 = scmp.ne.s32.totalorder %s98, %s114
      %p116 = scmp.eq.s32.totalorder %s22, 0
      %p117 = por %p115, %p116
      %p118 = scmp.le.s32.totalorder 1, %s16
      %p119 = scmp.lt.s32.totalorder %s16, 3
      %p120 = pnand %p118, %p119
      %p121 = pneg %p120
      // Predicated region
      $region9: #{tpu_custom_call.1} parent=5 // pred_check
        _
      $region10: #{tpu_custom_call.1} parent=5 // pred_check_branch
        %123 = sbr.rel (%p120) target = $region12
      $region11: #{tpu_custom_call.1} parent=5 // pred_region
        %s124 = ssub.s32 %s16, 1
        // Predicated region
        $region13: #{tpu_custom_call.1} parent=11 // pred_check
          %p125 = pneg %p63
        $region14: #{tpu_custom_call.1} parent=11 // pred_check_branch
          %127 = sbr.rel (%p125) target = $region16
        $region15: #{tpu_custom_call.1} parent=11 // pred_region
          %s129 = ssub.s32 1536, 1536
          %130 = vsyncadd [#allocation6], %s129
          %s131 = sshll.u32 [#allocation5], 4
          %s132 = int_to_ptr.vmem [resolvable:$true] %s131
          %137 = dma.hbm_to_vmem [thread:$0]  %s1, 1536, %s132, [#allocation6], 384, 384, 24
        $region16: #{tpu_custom_call.1} parent=11 // pred_fallthru
          _
        // Predicated region
        $region17: #{tpu_custom_call.1} parent=11 // pred_check
          %p138 = pneg %p84
        $region18: #{tpu_custom_call.1} parent=11 // pred_check_branch
          %140 = sbr.rel (%p138) target = $region20
        $region19: #{tpu_custom_call.1} parent=11 // pred_region
          _
        $region20: #{tpu_custom_call.1} parent=11 // pred_fallthru
          _
      $region12: #{tpu_custom_call.1} parent=5 // pred_fallthru
        _
      %p141 = scmp.lt.s32.totalorder %s16, 2
      // Predicated region
      $region21: #{tpu_custom_call.1} parent=5 // pred_check
        %p142 = pneg %p141
      $region22: #{tpu_custom_call.1} parent=5 // pred_check_branch
        %144 = sbr.rel (%p142) target = $region24
      $region23: #{tpu_custom_call.1} parent=5 // pred_region
        // Predicated region
        $region25: #{tpu_custom_call.1} parent=23 // pred_check
          %p145 = pneg %p36
        $region26: #{tpu_custom_call.1} parent=23 // pred_check_branch
          %147 = sbr.rel (%p145) target = $region28
        $region27: #{tpu_custom_call.1} parent=23 // pred_region
          %s148 = sand.u32 %s26, 1
          %s149 = scalar_lea.sflag [#allocation3], %s148
          %s150 = sand.u32 %s26, 1
          %s151 = smul.addr %s150, 16
          %s152 = scalar_lea.vmem [#allocation2], %s151
          %s153 = smul.u32 2, %s16
          %s155 = ssub.s32 256, 256
          %156 = vsyncadd %s149, %s155
          %s157 = smul.addr %s153, 128
          %s158 = scalar_lea.hbm %s0, %s157
          %s159 = sshll.u32 %s152, 4
          %s160 = int_to_ptr.vmem [resolvable:$true] %s159
          %165 = dma.hbm_to_vmem [thread:$0]  %s158, 256, %s160, %s149, 128, 128, 8
        $region28: #{tpu_custom_call.1} parent=23 // pred_fallthru
          _
      $region24: #{tpu_custom_call.1} parent=5 // pred_fallthru
        _
      %p166 = scmp.le.s32.totalorder 1, %s16
      %p167 = scmp.lt.s32.totalorder %s16, 3
      %p168 = pnand %p166, %p167
      %p169 = pneg %p168
      // Predicated region
      $region29: #{tpu_custom_call.1} parent=5 // pred_check
        _
      $region30: #{tpu_custom_call.1} parent=5 // pred_check_branch
        %171 = sbr.rel (%p168) target = $region32
      $region31: #{tpu_custom_call.1} parent=5 // pred_region
        %s172 = ssub.s32 %s16, 1
        %s173 = sand.u32 %s29, 1
        %s174 = scalar_lea.sflag [#allocation3], %s173
        %s175 = sand.u32 %s29, 1
        %s176 = smul.addr %s175, 16
        %s177 = scalar_lea.vmem [#allocation2], %s176
        // Predicated region
        $region33: #{tpu_custom_call.1} parent=31 // pred_check
          %p178 = pneg %p42
        $region34: #{tpu_custom_call.1} parent=31 // pred_check_branch
          %180 = sbr.rel (%p178) target = $region36
        $region35: #{tpu_custom_call.1} parent=31 // pred_region
          %181 = dma.done %s174, 256
        $region36: #{tpu_custom_call.1} parent=31 // pred_fallthru
          _
        // Predicated region
        $region37: #{tpu_custom_call.1} parent=31 // pred_check
          %p182 = pneg %p63
        $region38: #{tpu_custom_call.1} parent=31 // pred_check_branch
          %184 = sbr.rel (%p182) target = $region40
        $region39: #{tpu_custom_call.1} parent=31 // pred_region
          %185 = dma.done [#allocation6], 1536
        $region40: #{tpu_custom_call.1} parent=31 // pred_fallthru
          _
        %s186 = sand.u32 %s29, 1
        %s187 = scalar_lea.sflag [#allocation3], %s186
        %s188 = sand.u32 %s29, 1
        %s189 = smul.addr %s188, 16
        %s190 = scalar_lea.vmem [#allocation2], %s189
        %p191 = pneg %p42
        %p192 = pneg %p39
        %p193 = pneg %p63
        %p194 = pneg %p60
        %p195 = pneg %p84
        %p196 = pneg %p81
        %p197 = pneg %p110
        %p198 = pneg %p107
        %s199 = sand.u32 %s97, 1
        %s200 = scalar_lea.sflag [#allocation4], %s199
        %s201 = sand.u32 %s97, 1
        %s202 = smul.addr %s201, 16
        %s203 = scalar_lea.vmem [#allocation7], %s202
        %s204 = smul.u32 2, %s21
        %s205 = smul.u32 2, %s21
        %v207 = vld [vmem:[%s177] sm:$0xff]
        %v208 = vld [vmem:[%s177 + $0x8] sm:$0xff]
        %v209 = vpack.c.bf16 %v208, %v207
        %v210 = vld [vmem:[#allocation5 + $0x8] sm:$0xff]
        %v211 = vld [vmem:[#allocation5 + $0x20] sm:$0xff]
        %v212 = vld [vmem:[#allocation5 + $0x38] sm:$0xff]
        %v213 = vld [vmem:[#allocation5 + $0x50] sm:$0xff]
        %v214 = vld [vmem:[%s2 + $0x2] sm:$0x3]
        %v216 = vlaneseq
        %v217 = vshrl.u32 %v216, 7
        %v218 = vsub.s32 0, %v217
        %v219 = vrot.slane %v214, %v218
        %v220 = vlaneseq
        %v221 = vshrl.u32 %v220, 7
        %v222 = vsub.s32 1, %v221
        %v223 = vrot.slane %v214, %v222
        %v230 = vunpack.c.l.b16 %v210
        %v231 = vunpack.c.h.b16 %v210
        %v232 = vunpack.c.l.b16 %v211
        %v233 = vunpack.c.h.b16 %v211
        %v234 = vunpack.c.l.b16 %v212
        %v235 = vunpack.c.h.b16 %v212
        %v236 = vunpack.c.l.b16 %v213
        %v237 = vunpack.c.h.b16 %v213
        %v238 = vpack.c.b16 %v232, %v230
        %v239 = vpack.c.b16 %v233, %v231
        %v240 = vpack.c.b16 %v236, %v234
        %v241 = vpack.c.b16 %v237, %v235
        %vm246 = vcmask 261120
        %v248 = vsel %vm246, %v209, 0
        %250 = vmatprep.subr.bf16.mxu0 %v239
        %251 = vmatpush1.bf16.msra.mxu0 %v238
        %252 = vmatprep.subr.bf16.mxu0 %v241
        %253 = vmatpush1.bf16.msra.mxu0 %v240
        %254 = vmatprep.subr.bf16.mxu0 0
        %255 = vmatpush1.bf16.msra.mxu0 0
        %256 = vmatprep.subr.bf16.mxu0 0
        %257 = vmatpush1.bf16.msra.mxu0 0
        %258 = vmatprep.subr.bf16.mxu0 0
        %259 = vmatpush1.bf16.msra.mxu0 0
        %260 = vmatprep.subr.bf16.mxu0 0
        %261 = vmatpush1.bf16.msra.mxu0 0
        %262 = vmatprep.subr.bf16.mxu0 0
        %263 = vmatpush1.bf16.msra.mxu0 0
        %264 = vmatprep.subr.bf16.mxu0 0
        %265 = vmatpush1.bf16.msra.mxu0 0
        %266 = vmatprep.subr.bf16.mxu0 0
        %267 = vmatpush1.bf16.msra.mxu0 0
        %268 = vmatprep.subr.bf16.mxu0 0
        %269 = vmatpush1.bf16.msra.mxu0 0
        %270 = vmatprep.subr.bf16.mxu0 0
        %271 = vmatpush1.bf16.msra.mxu0 0
        %272 = vmatprep.subr.bf16.mxu0 0
        %273 = vmatpush1.bf16.msra.mxu0 0
        %274 = vmatprep.subr.bf16.mxu0 0
        %275 = vmatpush1.bf16.msra.mxu0 0
        %276 = vmatprep.subr.bf16.mxu0 0
        %277 = vmatpush1.bf16.msra.mxu0 0
        %278 = vmatprep.subr.bf16.mxu0 0
        %279 = vmatpush1.bf16.msra.mxu0 0
        %280 = vmatprep.subr.bf16.mxu0 0
        %281 = vmatpush1.bf16.msra.mxu0 0
        %282 = vmatprep.mubr.bf16.mxu0 0
        %283 = vmatmul.mubr.bf16.gmra.mrb[0].mxu0 %v248
        %v284 = vpop.f32.mrb[0].mxu0
        %v285 = vadd.f32 %v219, %v284
        %v286 = vpop.f32.mrb[0].mxu0
        %v287 = vadd.f32 %v223, %v286
        %v288 = vpop.f32.mrb[0].mxu0
        %v289 = vadd.f32 %v219, %v288
        %v290 = vpop.f32.mrb[0].mxu0
        %v291 = vadd.f32 %v223, %v290
        %292 = vdwg.mxu0
        %v293 = vxor.u32 %v285, 2147483648
        %v294 = vxor.u32 %v287, 2147483648
        %v295 = vxor.u32 %v289, 2147483648
        %v296 = vxor.u32 %v291, 2147483648
        %v297 = vmul.f32 %v293, 1.442695
        %v298 = vpow.pop %v297
        %v299 = vmul.f32 %v294, 1.442695
        %v300 = vpow.pop %v299
        %v301 = vmul.f32 %v295, 1.442695
        %v302 = vpow.pop %v301
        %v303 = vmul.f32 %v296, 1.442695
        %v304 = vpow.pop %v303
        %v305 = vadd.f32 %v298, 1.0
        %v306 = vadd.f32 %v300, 1.0
        %v307 = vadd.f32 %v302, 1.0
        %v308 = vadd.f32 %v304, 1.0
        %v309 = vrcp.pop %v305
        %v310 = vmul.f32 1.0, %v309
        %v311 = vrcp.pop %v306
        %v312 = vmul.f32 1.0, %v311
        %v313 = vrcp.pop %v307
        %v314 = vmul.f32 1.0, %v313
        %v315 = vrcp.pop %v308
        %v316 = vmul.f32 1.0, %v315
        %v317 = vld [vmem:[#allocation5] sm:$0xff]
        %v318 = vld [vmem:[#allocation5 + $0x18] sm:$0xff]
        %v319 = vld [vmem:[#allocation5 + $0x30] sm:$0xff]
        %v320 = vld [vmem:[#allocation5 + $0x48] sm:$0xff]
        %v321 = vld [vmem:[%s2] sm:$0x3]
        %v323 = vlaneseq
        %v324 = vshrl.u32 %v323, 7
        %v325 = vsub.s32 0, %v324
        %v326 = vrot.slane %v321, %v325
        %v327 = vlaneseq
        %v328 = vshrl.u32 %v327, 7
        %v329 = vsub.s32 1, %v328
        %v330 = vrot.slane %v321, %v329
        %v337 = vunpack.c.l.b16 %v317
        %v338 = vunpack.c.h.b16 %v317
        %v339 = vunpack.c.l.b16 %v318
        %v340 = vunpack.c.h.b16 %v318
        %v341 = vunpack.c.l.b16 %v319
        %v342 = vunpack.c.h.b16 %v319
        %v343 = vunpack.c.l.b16 %v320
        %v344 = vunpack.c.h.b16 %v320
        %v345 = vpack.c.b16 %v339, %v337
        %v346 = vpack.c.b16 %v340, %v338
        %v347 = vpack.c.b16 %v343, %v341
        %v348 = vpack.c.b16 %v344, %v342
        %353 = vmatprep.subr.bf16.mxu0 %v346
        %354 = vmatpush1.bf16.msra.mxu0 %v345
        %355 = vmatprep.subr.bf16.mxu0 %v348
        %356 = vmatpush1.bf16.msra.mxu0 %v347
        %357 = vmatprep.subr.bf16.mxu0 0
        %358 = vmatpush1.bf16.msra.mxu0 0
        %359 = vmatprep.subr.bf16.mxu0 0
        %360 = vmatpush1.bf16.msra.mxu0 0
        %361 = vmatprep.subr.bf16.mxu0 0
        %362 = vmatpush1.bf16.msra.mxu0 0
        %363 = vmatprep.subr.bf16.mxu0 0
        %364 = vmatpush1.bf16.msra.mxu0 0
        %365 = vmatprep.subr.bf16.mxu0 0
        %366 = vmatpush1.bf16.msra.mxu0 0
        %367 = vmatprep.subr.bf16.mxu0 0
        %368 = vmatpush1.bf16.msra.mxu0 0
        %369 = vmatprep.subr.bf16.mxu0 0
        %370 = vmatpush1.bf16.msra.mxu0 0
        %371 = vmatprep.subr.bf16.mxu0 0
        %372 = vmatpush1.bf16.msra.mxu0 0
        %373 = vmatprep.subr.bf16.mxu0 0
        %374 = vmatpush1.bf16.msra.mxu0 0
        %375 = vmatprep.subr.bf16.mxu0 0
        %376 = vmatpush1.bf16.msra.mxu0 0
        %377 = vmatprep.subr.bf16.mxu0 0
        %378 = vmatpush1.bf16.msra.mxu0 0
        %379 = vmatprep.subr.bf16.mxu0 0
        %380 = vmatpush1.bf16.msra.mxu0 0
        %381 = vmatprep.subr.bf16.mxu0 0
        %382 = vmatpush1.bf16.msra.mxu0 0
        %383 = vmatprep.subr.bf16.mxu0 0
        %384 = vmatpush1.bf16.msra.mxu0 0
        %385 = vmatprep.mubr.bf16.mxu0 0
        %386 = vmatmul.mubr.bf16.gmra.mrb[0].mxu0 %v248
        %v387 = vpop.f32.mrb[0].mxu0
        %v388 = vadd.f32 %v326, %v387
        %v389 = vpop.f32.mrb[0].mxu0
        %v390 = vadd.f32 %v330, %v389
        %v391 = vpop.f32.mrb[0].mxu0
        %v392 = vadd.f32 %v326, %v391
        %v393 = vpop.f32.mrb[0].mxu0
        %v394 = vadd.f32 %v330, %v393
        %395 = vdwg.mxu0
        %v396 = vadd.f32 %v310, %v388
        %v397 = vadd.f32 %v312, %v390
        %v398 = vadd.f32 %v314, %v392
        %v399 = vadd.f32 %v316, %v394
        %v400 = vld [vmem:[#allocation5 + $0x10] sm:$0xff]
        %v401 = vld [vmem:[#allocation5 + $0x28] sm:$0xff]
        %v402 = vld [vmem:[#allocation5 + $0x40] sm:$0xff]
        %v403 = vld [vmem:[#allocation5 + $0x58] sm:$0xff]
        %v404 = vld [vmem:[%s2 + $0x4] sm:$0x3]
        %v406 = vlaneseq
        %v407 = vshrl.u32 %v406, 7
        %v408 = vsub.s32 0, %v407
        %v409 = vrot.slane %v404, %v408
        %v410 = vlaneseq
        %v411 = vshrl.u32 %v410, 7
        %v412 = vsub.s32 1, %v411
        %v413 = vrot.slane %v404, %v412
        %v420 = vunpack.c.l.b16 %v400
        %v421 = vunpack.c.h.b16 %v400
        %v422 = vunpack.c.l.b16 %v401
        %v423 = vunpack.c.h.b16 %v401
        %v424 = vunpack.c.l.b16 %v402
        %v425 = vunpack.c.h.b16 %v402
        %v426 = vunpack.c.l.b16 %v403
        %v427 = vunpack.c.h.b16 %v403
        %v428 = vpack.c.b16 %v422, %v420
        %v429 = vpack.c.b16 %v423, %v421
        %v430 = vpack.c.b16 %v426, %v424
        %v431 = vpack.c.b16 %v427, %v425
        %436 = vmatprep.subr.bf16.mxu0 %v429
        %437 = vmatpush1.bf16.msra.mxu0 %v428
        %438 = vmatprep.subr.bf16.mxu0 %v431
        %439 = vmatpush1.bf16.msra.mxu0 %v430
        %440 = vmatprep.subr.bf16.mxu0 0
        %441 = vmatpush1.bf16.msra.mxu0 0
        %442 = vmatprep.subr.bf16.mxu0 0
        %443 = vmatpush1.bf16.msra.mxu0 0
        %444 = vmatprep.subr.bf16.mxu0 0
        %445 = vmatpush1.bf16.msra.mxu0 0
        %446 = vmatprep.subr.bf16.mxu0 0
        %447 = vmatpush1.bf16.msra.mxu0 0
        %448 = vmatprep.subr.bf16.mxu0 0
        %449 = vmatpush1.bf16.msra.mxu0 0
        %450 = vmatprep.subr.bf16.mxu0 0
        %451 = vmatpush1.bf16.msra.mxu0 0
        %452 = vmatprep.subr.bf16.mxu0 0
        %453 = vmatpush1.bf16.msra.mxu0 0
        %454 = vmatprep.subr.bf16.mxu0 0
        %455 = vmatpush1.bf16.msra.mxu0 0
        %456 = vmatprep.subr.bf16.mxu0 0
        %457 = vmatpush1.bf16.msra.mxu0 0
        %458 = vmatprep.subr.bf16.mxu0 0
        %459 = vmatpush1.bf16.msra.mxu0 0
        %460 = vmatprep.subr.bf16.mxu0 0
        %461 = vmatpush1.bf16.msra.mxu0 0
        %462 = vmatprep.subr.bf16.mxu0 0
        %463 = vmatpush1.bf16.msra.mxu0 0
        %464 = vmatprep.subr.bf16.mxu0 0
        %465 = vmatpush1.bf16.msra.mxu0 0
        %466 = vmatprep.subr.bf16.mxu0 0
        %467 = vmatpush1.bf16.msra.mxu0 0
        %468 = vmatprep.mubr.bf16.mxu0 0
        %469 = vmatmul.mubr.bf16.gmra.mrb[0].mxu0 %v248
        %v470 = vpop.f32.mrb[0].mxu0
        %v471 = vadd.f32 %v409, %v470
        %v472 = vpop.f32.mrb[0].mxu0
        %v473 = vadd.f32 %v413, %v472
        %v474 = vpop.f32.mrb[0].mxu0
        %v475 = vadd.f32 %v409, %v474
        %v476 = vpop.f32.mrb[0].mxu0
        %v477 = vadd.f32 %v413, %v476
        %478 = vdwg.mxu0
        %v479 = vadd.f32 %v396, %v471
        %v480 = vadd.f32 %v397, %v473
        %v481 = vadd.f32 %v398, %v475
        %v482 = vadd.f32 %v399, %v477
        %v483 = vmax.f32 %v479, 0.0
        %v484 = vmax.f32 %v480, 0.0
        %v485 = vmax.f32 %v481, 0.0
        %v486 = vmax.f32 %v482, 0.0
        %v487 = vpack.c.bf16 %v485, %v483
        %v488 = vpack.c.bf16 %v486, %v484
        %v491 = vunpack.c.l.b16 %v487
        %v492 = vunpack.c.l.b16 %v488
        %v493 = vunpack.c.h.b16 %v487
        %v494 = vunpack.c.h.b16 %v488
        %v495 = vpack.c.b16 %v492, %v491
        %v496 = vpack.c.b16 %v494, %v493
        %499 = vst [vmem:[%s203] sm:$0xff] %v495
        %500 = vst [vmem:[%s203 + $0x8] sm:$0xff] %v496
        %s501 = sand.u32 %s97, 1
        %s502 = scalar_lea.sflag [#allocation4], %s501
        %s503 = sand.u32 %s97, 1
        %s504 = smul.addr %s503, 16
        %s505 = scalar_lea.vmem [#allocation7], %s504
        // Predicated region
        $region41: #{tpu_custom_call.1} parent=31 // pred_check
          %p506 = pneg %p107
        $region42: #{tpu_custom_call.1} parent=31 // pred_check_branch
          %508 = sbr.rel (%p506) target = $region44
        $region43: #{tpu_custom_call.1} parent=31 // pred_region
          %s509 = smul.u32 2, %s21
          %s511 = ssub.s32 256, 256
          %512 = vsyncadd %s502, %s511
          %s513 = smul.addr %s509, 2
          %s514 = smul.addr %s513, 64
          %s515 = scalar_lea.hbm %s3, %s514
          %s516 = sshll.u32 %s505, 4
          %s517 = int_to_ptr.vmem [resolvable:$true] %s516
          %522 = dma.vmem_to_hbm [thread:$0]  %s517, 256, %s515, %s502, 128, 128, 8
        $region44: #{tpu_custom_call.1} parent=31 // pred_fallthru
          _
      $region32: #{tpu_custom_call.1} parent=5 // pred_fallthru
        _
      %p523 = scmp.le.s32.totalorder 2, %s16
      // Predicated region
      $region45: #{tpu_custom_call.1} parent=5 // pred_check
        %p524 = pneg %p523
      $region46: #{tpu_custom_call.1} parent=5 // pred_check_branch
        %526 = sbr.rel (%p524) target = $region48
      $region47: #{tpu_custom_call.1} parent=5 // pred_region
        %s527 = ssub.s32 %s16, 2
        // Predicated region
        $region49: #{tpu_custom_call.1} parent=47 // pred_check
          %p528 = pneg %p113
        $region50: #{tpu_custom_call.1} parent=47 // pred_check_branch
          %530 = sbr.rel (%p528) target = $region52
        $region51: #{tpu_custom_call.1} parent=47 // pred_region
          %s531 = sand.u32 %s98, 1
          %s532 = scalar_lea.sflag [#allocation4], %s531
          %s533 = sand.u32 %s98, 1
          %s534 = smul.addr %s533, 16
          %s535 = scalar_lea.vmem [#allocation7], %s534
          %536 = dma.done %s532, 256
        $region52: #{tpu_custom_call.1} parent=47 // pred_fallthru
          _
      $region48: #{tpu_custom_call.1} parent=5 // pred_fallthru
        _
    $region6: #{tpu_custom_call.1} parent=1 // loop_footer
      %s20 = sadd.s32 1, %s16
    $region7: #{tpu_custom_call.1} parent=1 // loop_footer_branch
      %15 = sbr.rel target = $region3
    $region8: #{tpu_custom_call.1} parent=1 // loop_exit
      _
    %537 = vsyncpa [#allocation3], 1
    %s538 = scalar_lea.sflag [#allocation3], 1
    %539 = vsyncpa %s538, 1
    %540 = vsyncpa [#allocation6], 1
    %541 = vsyncpa [#allocation4], 1
    %s542 = scalar_lea.sflag [#allocation4], 1
    %543 = vsyncpa %s542, 1

</llo_original>
